<compile_context>
chip_gen: v6e
topology: v6e:2x2x1
jax: 0.10.0
libtpu: 0.0.40
codegen_flags: <defaults>
</compile_context>

<pallas_src>
import functools
import numpy as np
import jax
import jax.numpy as jnp
from jax.experimental import pallas as pl
from jax.experimental.pallas import tpu as pltpu


# --------------------------------------------------------------------------
# pe buffer construction (identical to the PyTorch __init__)
# --------------------------------------------------------------------------
def make_sinusoidal_pe(max_len: int, d_model: int) -> jnp.ndarray:
    position = np.arange(0, max_len, dtype=np.float32)[:, None]             # (max_len, 1)
    div_term = np.exp(np.arange(0, d_model, 2, dtype=np.float32)
                      * (-np.log(10000.0) / d_model))                        # (d_model/2,)
    pe = np.zeros((max_len, d_model), dtype=np.float32)
    pe[:, 0::2] = np.sin(position * div_term)
    pe[:, 1::2] = np.cos(position * div_term)
    # unsqueeze(0).transpose(0, 1) -> (max_len, 1, d_model)
    return jnp.asarray(pe[:, None, :])


# --------------------------------------------------------------------------
# Kernel
# --------------------------------------------------------------------------
def _pos_enc_kernel(*refs, n_seg, seg_width, p, training):
    # x_ref : (TS, LB) tile, batch folded into the lane axis
    # pe_ref: (TS, seg_width) tile (seg_width == D, or a 128-aligned chunk of D)
    # u_ref : optional (TS, LB) uniform randoms for training-mode dropout
    use_dropout = training and p > 0.0
    if use_dropout:
        x_ref, pe_ref, u_ref, o_ref = refs
    else:
        x_ref, pe_ref, o_ref = refs
        u_ref = None

    pe = pe_ref[...]
    scale = np.float32(1.0 / (1.0 - p)) if p < 1.0 else np.float32(0.0)

    if n_seg == 1:
        y = x_ref[...] + pe
        if u_ref is not None:
            y = jnp.where(u_ref[...] >= p, y * scale, jnp.zeros_like(y))
        o_ref[...] = y.astype(o_ref.dtype)
    else:
        # Per-batch-segment adds with static slices; pe is broadcast over the
        # batch by re-using the same (TS, D) tile, no concatenate / relayout.
        for b in range(n_seg):
            sl = slice(b * seg_width, (b + 1) * seg_width)
            y = x_ref[:, sl] + pe
            if u_ref is not None:
                y = jnp.where(u_ref[:, sl] >= p, y * scale, jnp.zeros_like(y))
            o_ref[:, sl] = y.astype(o_ref.dtype)


# --------------------------------------------------------------------------
# Tiling heuristics
# --------------------------------------------------------------------------
def _round_down8(n: int) -> int:
    return (n // 8) * 8


def _device_tile_config():
    """(target bytes per x tile, explicit vmem limit or None) per generation."""
    try:
        kind = jax.devices()[0].device_kind.lower()
    except Exception:
        kind = ""
    if "v7" in kind:
        return 8 << 20, 48 << 20          # bigger tiles; raise scoped VMEM (64 MiB phys)
    if "v6" in kind:
        return 4 << 20, None              # fits the 32 MiB scoped default
    return 2 << 20, None                  # v5e (16 MiB scoped default) / CPU interpret


def _choose_blocks(S, B, D, itemsize, target):
    """Returns (TS, LB, PE_LB): sequence rows per tile, x lane-block width,
    pe lane-block width.  LB always divides B*D; PE_LB divides LB."""
    full = B * D
    row_bytes = full * itemsize

    if S * row_bytes <= target:           # whole array in one tile
        return S, full, D
    if 8 * row_bytes <= target:           # block sequence rows only
        ts = min(S, max(8, _round_down8(target // row_bytes)))
        return ts, full, D

    # A single folded row exceeds the budget: block the lane axis too,
    # in units of whole batches (keeps pe segment alignment trivial).
    seg_bytes = D * itemsize
    if 8 * seg_bytes <= target:
        nb_max = max(1, target // (8 * seg_bytes))
        nb = 0
        for c in range(min(B, nb_max), 0, -1):
            if B % c == 0 and (c * D) % 128 == 0:
                nb = c
                break
        lb = nb * D if nb > 0 else full   # fall back to full width if not 128-aligned
        ts = min(S, max(8, _round_down8(max(1, target // (lb * itemsize)))))
        return ts, lb, D

    # Even an (8, D) tile is too big: split d_model itself (needs 128-alignment).
    if D % 128 == 0:
        lanes = max(1, (target // (8 * itemsize)) // 128)   # budget in 128-lane groups
        nblk = D // 128
        pick = 1
        for c in range(min(nblk, lanes), 0, -1):
            if nblk % c == 0:
                pick = c
                break
        lb = pick * 128
        return min(S, 8), lb, lb

    # TODO(synk): huge, non-128-aligned d_model falls back to full-width rows
    # (may exceed the VMEM budget for extreme shapes).
    return min(S, 8), full, D


# --------------------------------------------------------------------------
# Wrapper
# --------------------------------------------------------------------------
def positional_encoding(x: jnp.ndarray,
                        pe_full: jnp.ndarray,
                        *,
                        dropout_p: float = 0.1,
                        training: bool = False,
                        rng_key=None) -> jnp.ndarray:
    """x: (S, B, D) float;  pe_full: (max_len, 1, D) float32."""
    S, B, D = x.shape
    pe = pe_full[:S, 0, :].astype(x.dtype)        # (S, D), match x dtype
    x2 = x.reshape(S, B * D)                      # fold batch into lanes (free reshape)

    target, vmem_limit = _device_tile_config()
    itemsize = x.dtype.itemsize
    TS, LB, PE_LB = _choose_blocks(S, B, D, itemsize, target)

    # Give both v7x TensorCores work even when everything fits in one tile
    # (neutral on single-TC chips).
    if TS >= S and (B * D) // LB == 1 and S >= 16:
        half = -(-S // 2)
        TS = min(S, ((half + 7) // 8) * 8)

    grid = (pl.cdiv(S, TS), (B * D) // LB)
    n_seg = LB // PE_LB

    x_spec = pl.BlockSpec((TS, LB), lambda i, j: (i, j))
    if PE_LB == D:
        pe_spec = pl.BlockSpec((TS, D), lambda i, j: (i, 0))
    else:
        dpb = D // PE_LB
        pe_spec = pl.BlockSpec((TS, PE_LB), lambda i, j: (i, j % dpb))

    args = [x2, pe]
    in_specs = [x_spec, pe_spec]

    use_dropout = training and dropout_p > 0.0
    if use_dropout:
        # TODO(synk): mask will not match torch.nn.Dropout's RNG stream
        # bit-for-bit; keep-probability / scaling semantics are identical.
        if rng_key is None:
            rng_key = jax.random.PRNGKey(0)
        u = jax.random.uniform(rng_key, (S, B * D), dtype=jnp.float32)
        args.append(u)
        in_specs.append(pl.BlockSpec((TS, LB), lambda i, j: (i, j)))

    kernel = functools.partial(_pos_enc_kernel, n_seg=n_seg, seg_width=PE_LB,
                               p=float(dropout_p), training=training)

    cp_kwargs = dict(dimension_semantics=("parallel", "parallel"))
    if vmem_limit is not None:
        cp_kwargs["vmem_limit_bytes"] = vmem_limit

    out2 = pl.pallas_call(
        kernel,
        out_shape=jax.ShapeDtypeStruct((S, B * D), x.dtype),
        grid=grid,
        in_specs=in_specs,
        out_specs=pl.BlockSpec((TS, LB), lambda i, j: (i, j)),
        compiler_params=pltpu.CompilerParams(**cp_kwargs),
    )(*args)

    return out2.reshape(S, B, D)


# --------------------------------------------------------------------------
# Demo / self-test
# --------------------------------------------------------------------------
if __name__ == "__main__":
    # Small shapes consistent with the module's forward: (seq_len, batch, d_model)
    S, B, D = 8, 2, 32
    MAX_LEN = 64
    P = 0.1

    key = jax.random.PRNGKey(0)
    kx, ku = jax.random.split(key)
    x = jax.random.normal(kx, (S, B, D), dtype=jnp.float32)
    pe_full = make_sinusoidal_pe(MAX_LEN, D)

    # Eval mode (dropout == identity): exact match with the reference.
    out = positional_encoding(x, pe_full, dropout_p=P, training=False)
    out = jax.block_until_ready(out)
    ref = x + pe_full[:S]
    np.testing.assert_allclose(np.asarray(out), np.asarray(ref), rtol=1e-6, atol=1e-6)

    # Training mode: exercise the dropout path.  Kept elements must equal
    # (x + pe) / (1 - p); dropped elements are exactly zero.
    out_tr = positional_encoding(x, pe_full, dropout_p=P, training=True, rng_key=ku)
    out_tr = jax.block_until_ready(out_tr)
    assert out_tr.shape == (S, B, D)
    out_tr_np = np.asarray(out_tr)
    assert np.all(np.isfinite(out_tr_np))
    kept = out_tr_np != 0.0
    np.testing.assert_allclose(out_tr_np[kept],
                               (np.asarray(ref) / (1.0 - P))[kept],
                               rtol=1e-6, atol=1e-6)

    print("KERNEL_OK")
</pallas_src>

<mosaic_0001>
module attributes {stable_mosaic.version = 11 : i64} {
  func.func @_pos_enc_kernel(%arg0: i32, %arg1: i32, %arg2: memref<8x64xf32, #tpu.memory_space<vmem>>, %arg3: memref<8x32xf32, #tpu.memory_space<vmem>>, %arg4: memref<8x64xf32, #tpu.memory_space<vmem>>) attributes {dimension_semantics = [#tpu.dimension_semantics<parallel>, #tpu.dimension_semantics<parallel>], iteration_bounds = array<i64: 1, 1>, scalar_prefetch = 0 : i64, scratch_operands = 0 : i64, tpu.core_type = #tpu.core_type<tc>, window_params = [{transform_indices = @transform_0, window_bounds = array<i64: 8, 64>}, {transform_indices = @transform_1, window_bounds = array<i64: 8, 32>}, {transform_indices = @transform_2, window_bounds = array<i64: 8, 64>}]} {
    %c0 = arith.constant 0 : index
    %c0_0 = arith.constant 0 : index
    %0 = vector.load %arg3[%c0, %c0_0] : memref<8x32xf32, #tpu.memory_space<vmem>>, vector<8x32xf32>
    %c0_1 = arith.constant 0 : index
    %c0_2 = arith.constant 0 : index
    %1 = vector.load %arg2[%c0_1, %c0_2] : memref<8x64xf32, #tpu.memory_space<vmem>>, vector<8x32xf32>
    %2 = arith.addf %1, %0 : vector<8x32xf32>
    %c0_3 = arith.constant 0 : index
    %c0_4 = arith.constant 0 : index
    %3 = vector.load %arg4[%c0_3, %c0_4] : memref<8x64xf32, #tpu.memory_space<vmem>>, vector<8x32xf32>
    tpu.vector_store %arg4[%c0_3, %c0_4], %2 {strides = array<i32>} : memref<8x64xf32, #tpu.memory_space<vmem>>, vector<8x32xf32>,
    %c0_5 = arith.constant 0 : index
    %c32 = arith.constant 32 : index
    %4 = vector.load %arg2[%c0_5, %c32] : memref<8x64xf32, #tpu.memory_space<vmem>>, vector<8x32xf32>
    %5 = arith.addf %4, %0 : vector<8x32xf32>
    %c0_6 = arith.constant 0 : index
    %c32_7 = arith.constant 32 : index
    %6 = vector.load %arg4[%c0_6, %c32_7] : memref<8x64xf32, #tpu.memory_space<vmem>>, vector<8x32xf32>
    tpu.vector_store %arg4[%c0_6, %c32_7], %5 {strides = array<i32>} : memref<8x64xf32, #tpu.memory_space<vmem>>, vector<8x32xf32>,
    return
  }
  func.func @transform_0(%arg0: i32, %arg1: i32) -> (i32, i32) {
    %c0_i32 = arith.constant 0 : i32
    return %arg0, %arg1 : i32, i32
  }
  func.func @transform_1(%arg0: i32, %arg1: i32) -> (i32, i32) {
    %c0_i32 = arith.constant 0 : i32
    %c0_i32_0 = arith.constant 0 : i32
    return %arg0, %c0_i32 : i32, i32
  }
  func.func @transform_2(%arg0: i32, %arg1: i32) -> (i32, i32) {
    %c0_i32 = arith.constant 0 : i32
    return %arg0, %arg1 : i32, i32
  }
}

</mosaic_0001>

<llo_original>
// kernel: tpu_custom_call.1
$region0: #{tpu_custom_call.1}
  #allocation0 [shape = 'u32[]', space=smem, size = 0x4, offset = 0x4, fixed_abs, tag = 'smem constant byte address 0x4 - core index']
  #allocation1 [shape = 'u32[144,128]{1,0:T(1,128)}', space=vmem, size = 0x12000, scoped, tag = 'internal scratch']
  %s0 = inlined_call_operand.hbm [shape: f32[8,64], index: 0, kind: input, shape index: {}]
  %s1 = inlined_call_operand.hbm [shape: f32[8,32], index: 1, kind: input, shape index: {}]
  %s2 = inlined_call_operand.hbm [shape: f32[8,64], index: 2, kind: output, shape index: {}]
  %s3 = sld [smem:[#allocation0]]
  $region26: #{tpu_custom_call.1} parent=0
    _
  %s5 = ssub.s32 1, %s3
  %s6 = scalar_select 0, %s5, %s3
  $region1: #{tpu_custom_call.1} parent=0
    #allocation2 [shape = 'u8[4096]{0}', space=vmem, size = 0x1000, scoped, tag = 'input window, operand 0, single buffered']
    #allocation3 [shape = 's32[1]{0}', space=sflag, size = 0x4, scoped, tag = 'scoped memory for tpu_custom_call.1']
    #allocation4 [shape = 's32[1]{0}', space=sflag, size = 0x4, scoped, tag = 'scoped memory for tpu_custom_call.1']
    #allocation5 [shape = 'u8[4096]{0}', space=vmem, size = 0x1000, scoped, tag = 'input window, operand 1, single buffered']
    #allocation6 [shape = 's32[1]{0}', space=sflag, size = 0x4, scoped, tag = 'scoped memory for tpu_custom_call.1']
    #allocation7 [shape = 'u8[4096]{0}', space=vmem, size = 0x1000, scoped, tag = 'output window, operand 0, single buffered']
    %7 = vsyncpa [#allocation3], 0
    %8 = vsyncpa [#allocation6], 0
    %9 = vsyncpa [#allocation4], 0
    // Predicated region
    $region2: #{tpu_custom_call.1} parent=1 // pred_check
      _
    $region3: #{tpu_custom_call.1} parent=1 // pred_check_branch
      %11 = sbr.rel (0) target = $region5
    $region4: #{tpu_custom_call.1} parent=1 // pred_region
      %s13 = ssub.s32 128, 128
      %14 = vsyncadd [#allocation3], %s13
      %s16 = sshll.u32 [#allocation2], 4
      %s17 = int_to_ptr.vmem [resolvable:$true] %s16
      %19 = dma.hbm_to_vmem [thread:$0]  %s0, 128, %s17, [#allocation3]
    $region5: #{tpu_custom_call.1} parent=1 // pred_fallthru
      _
    // Predicated region
    $region6: #{tpu_custom_call.1} parent=1 // pred_check
      _
    $region7: #{tpu_custom_call.1} parent=1 // pred_check_branch
      %21 = sbr.rel (0) target = $region9
    $region8: #{tpu_custom_call.1} parent=1 // pred_region
      %s23 = ssub.s32 128, 128
      %24 = vsyncadd [#allocation6], %s23
      %s26 = sshll.u32 [#allocation5], 4
      %s27 = int_to_ptr.vmem [resolvable:$true] %s26
      %29 = dma.hbm_to_vmem [thread:$0]  %s1, 128, %s27, [#allocation6]
    $region9: #{tpu_custom_call.1} parent=1 // pred_fallthru
      _
    // Predicated region
    $region10: #{tpu_custom_call.1} parent=1 // pred_check
      _
    $region11: #{tpu_custom_call.1} parent=1 // pred_check_branch
      %31 = sbr.rel (0) target = $region13
    $region12: #{tpu_custom_call.1} parent=1 // pred_region
      %32 = dma.done [#allocation3], 128
    $region13: #{tpu_custom_call.1} parent=1 // pred_fallthru
      _
    // Predicated region
    $region14: #{tpu_custom_call.1} parent=1 // pred_check
      _
    $region15: #{tpu_custom_call.1} parent=1 // pred_check_branch
      %34 = sbr.rel (0) target = $region17
    $region16: #{tpu_custom_call.1} parent=1 // pred_region
      %35 = dma.done [#allocation6], 128
    $region17: #{tpu_custom_call.1} parent=1 // pred_fallthru
      _
    %v36 = vld [vmem:[#allocation5] sm:$0xff]
    %v37 = vld [vmem:[#allocation2] sm:$0xff]
    %v38 = vadd.f32 %v37, %v36
    %vm39 = vcmask 261120
    %40 = vst.msk [vmem:[#allocation7] sm:$0xff] %vm39, %v38
    %v41 = vld [vmem:[#allocation2] sm:$0xff]
    %43 = vrot.lane.b32.xlu0 %v36, 32
    %v44 = vpop.permute.xlu0 %43
    %v46 = vadd.f32 %v41, %v44
    %vm47 = vcmask 523520
    %48 = vst.msk [vmem:[#allocation7] sm:$0xff] %vm47, %v46
    // Predicated region
    $region18: #{tpu_custom_call.1} parent=1 // pred_check
      _
    $region19: #{tpu_custom_call.1} parent=1 // pred_check_branch
      %50 = sbr.rel (0) target = $region21
    $region20: #{tpu_custom_call.1} parent=1 // pred_region
      %s52 = ssub.s32 128, 128
      %53 = vsyncadd [#allocation4], %s52
      %s55 = sshll.u32 [#allocation7], 4
      %s56 = int_to_ptr.vmem [resolvable:$true] %s55
      %58 = dma.vmem_to_hbm [thread:$0]  %s56, 128, %s2, [#allocation4]
    $region21: #{tpu_custom_call.1} parent=1 // pred_fallthru
      _
    // Predicated region
    $region22: #{tpu_custom_call.1} parent=1 // pred_check
      _
    $region23: #{tpu_custom_call.1} parent=1 // pred_check_branch
      %60 = sbr.rel (0) target = $region25
    $region24: #{tpu_custom_call.1} parent=1 // pred_region
      %61 = dma.done [#allocation4], 128
    $region25: #{tpu_custom_call.1} parent=1 // pred_fallthru
      _
    %62 = vsyncpa [#allocation3], 1
    %63 = vsyncpa [#allocation6], 1
    %64 = vsyncpa [#allocation4], 1

</llo_original>
